<compile_context>
chip_gen: v6e
topology: v6e:2x2x1
jax: 0.10.0
libtpu: 0.0.40
codegen_flags: <defaults>
</compile_context>

<pallas_src>
import functools

import jax
import jax.numpy as jnp
from jax.experimental import pallas as pl
from jax.experimental.pallas import tpu as pltpu


def _norm_kernel(x_ref, alpha_ref, bias_ref, o_ref, *, eps, d_model, use_mxu_reduce):
    # x_ref: (block_rows, d_model); alpha_ref / bias_ref: (1, d_model), f32.
    x = x_ref[...].astype(jnp.float32)
    a = alpha_ref[...]          # pre-cast to f32 in the wrapper (grid-invariant)
    b = bias_ref[...]

    if use_mxu_reduce:
        # Small d_model: lane-reduce on the (idle) MXU instead of the XLU,
        # which otherwise becomes the saturating slot on v7x at small d_model.
        ones_col = jnp.ones((d_model, 1), jnp.float32)
        s = jnp.dot(x, ones_col, preferred_element_type=jnp.float32)
    else:
        s = jnp.sum(x, axis=-1, keepdims=True)
    mean = s * jnp.float32(1.0 / d_model)

    # Two-pass variance: numerically robust, and the tile is already in VMEM
    # so the second sweep hides under the HBM-bound DMA on v5e/v6e.
    xc = x - mean
    if use_mxu_reduce:
        ss = jnp.dot(xc * xc, ones_col, preferred_element_type=jnp.float32)
    else:
        ss = jnp.sum(xc * xc, axis=-1, keepdims=True)

    # Unbiased (ddof=1) variance, matching torch.std's default.
    var = ss * jnp.float32(1.0 / (d_model - 1))
    std = jnp.sqrt(var)
    denom = std + jnp.float32(eps)

    # Per-row reciprocal on the EUP instead of a full-tile divide on the VPU;
    # one Newton step restores ~f32 accuracy on top of the approx rcp.
    inv = pl.reciprocal(denom, approx=True)
    inv = inv * (jnp.float32(2.0) - denom * inv)

    o_ref[...] = ((xc * inv) * a + b).astype(o_ref.dtype)


def _round_up(n, m):
    return ((n + m - 1) // m) * m


def _vmem_budgets():
    """Generation-aware (tile budget, max_block_rows, vmem_limit_bytes)."""
    vmem_cap = None
    try:
        info = pltpu.get_tpu_info()
        vmem_cap = getattr(info, "vmem_capacity_bytes", None)
    except Exception:
        vmem_cap = None
    if vmem_cap is None:
        vmem_cap = 64 << 20          # conservative fallback: assume v7x-sized VMEM
    if vmem_cap >= (96 << 20):
        # 128 MiB parts (v5e / v6e): one TensorCore owns all of VMEM.
        return 72 << 20, 4096, 96 << 20
    # 64 MiB parts (v7x): leave headroom under the physical ceiling.
    return 24 << 20, 2048, 48 << 20


def _choose_block_rows(rows, d_model, in_itemsize, out_itemsize):
    """Largest sublane-aligned row tile whose double-buffered (in + out) DMA
    traffic fits the generation-specific VMEM budget."""
    vmem_budget, max_block_rows, _ = _vmem_budgets()
    # 2 pipeline buffers each for the input and output block, charged at their
    # actual dtype widths (f32 intermediates stream through vregs).
    bytes_per_row = 2 * d_model * (in_itemsize + out_itemsize)
    br = min(max_block_rows, vmem_budget // max(bytes_per_row, 1))
    br = max(8, (br // 8) * 8)                   # sublane multiple
    br = min(br, _round_up(rows, 8))             # don't tile past the data
    # Guarantee >= 2 grid steps when there is enough work so both v7x
    # TensorCores get a share (no-op cost on the single-TC v5e / v6e).
    if rows > 8 and -(-rows // br) < 2:
        br = max(8, _round_up(-(-rows // 2), 8))
    return br


def norm_forward(x, alpha, bias, eps=1e-6, block_rows=None):
    """Pallas implementation of Norm.forward.

    x:     (..., d_model)
    alpha: (d_model,)
    bias:  (d_model,)
    """
    d_model = x.shape[-1]
    assert d_model >= 2, "unbiased std (ddof=1) requires d_model >= 2"
    lead_shape = x.shape[:-1]
    rows = 1
    for s in lead_shape:
        rows *= s

    x2d = x.reshape(rows, d_model)
    # Hoist the param casts out of the kernel (grid is a sequential loop).
    alpha2d = alpha.reshape(1, d_model).astype(jnp.float32)
    bias2d = bias.reshape(1, d_model).astype(jnp.float32)

    if block_rows is None:
        block_rows = _choose_block_rows(
            rows, d_model, x.dtype.itemsize, x.dtype.itemsize)
    _, _, vmem_limit = _vmem_budgets()

    # Ragged grid: no pad / slice round-trips through HBM. Overhang rows of
    # the last block read benign garbage (rows are independent) and their
    # writes are masked by Pallas.
    grid = (pl.cdiv(rows, block_rows),)
    kernel = functools.partial(
        _norm_kernel, eps=eps, d_model=d_model,
        use_mxu_reduce=(d_model <= 256))

    out2d = pl.pallas_call(
        kernel,
        out_shape=jax.ShapeDtypeStruct((rows, d_model), x.dtype),
        grid_spec=pltpu.PrefetchScalarGridSpec(
            num_scalar_prefetch=0,
            grid=grid,
            in_specs=[
                pl.BlockSpec((block_rows, d_model), lambda i: (i, 0)),
                pl.BlockSpec((1, d_model), lambda i: (0, 0)),
                pl.BlockSpec((1, d_model), lambda i: (0, 0)),
            ],
            out_specs=pl.BlockSpec((block_rows, d_model), lambda i: (i, 0)),
        ),
        compiler_params=pltpu.CompilerParams(
            # Row axis is fully independent: no-op on single-TC v5e/v6e,
            # shards the grid across the two TensorCores on v7x.
            dimension_semantics=("parallel",),
            vmem_limit_bytes=vmem_limit,
        ),
    )(x2d, alpha2d, bias2d)

    return out2d.reshape(*lead_shape, d_model)


if __name__ == "__main__":
    key = jax.random.PRNGKey(0)
    batch, seq, d_model = 2, 8, 32

    x = jax.random.normal(key, (batch, seq, d_model), dtype=jnp.float32)

    # Deterministic parameter init, as in the PyTorch module __init__.
    alpha = jnp.ones((d_model,), dtype=jnp.float32)
    bias = jnp.zeros((d_model,), dtype=jnp.float32)

    out = norm_forward(x, alpha, bias, eps=1e-6)
    out = jax.block_until_ready(out)

    # Reference check in plain JAX (unbiased std, matching torch.std default).
    mean = jnp.mean(x, axis=-1, keepdims=True)
    std = jnp.sqrt(jnp.sum((x - mean) ** 2, axis=-1, keepdims=True) / (d_model - 1))
    ref = alpha * (x - mean) / (std + 1e-6) + bias
    assert jnp.allclose(out, ref, atol=2e-5, rtol=2e-5), "mismatch vs reference"

    print("KERNEL_OK")
</pallas_src>

<mosaic_0001>
module attributes {stable_mosaic.version = 11 : i64} {
  func.func @_norm_kernel(%arg0: i32, %arg1: memref<8x32xf32, #tpu.memory_space<vmem>>, %arg2: memref<1x32xf32, #tpu.memory_space<vmem>>, %arg3: memref<1x32xf32, #tpu.memory_space<vmem>>, %arg4: memref<8x32xf32, #tpu.memory_space<vmem>>) attributes {dimension_semantics = [#tpu.dimension_semantics<parallel>], iteration_bounds = array<i64: 2>, scalar_prefetch = 0 : i64, scratch_operands = 0 : i64, tpu.core_type = #tpu.core_type<tc>, window_params = [{transform_indices = @transform_0, window_bounds = array<i64: 8, 32>}, {pipeline_mode = #tpu.pipeline_mode<synchronous>, transform_indices = @transform_1, window_bounds = array<i64: 1, 32>}, {pipeline_mode = #tpu.pipeline_mode<synchronous>, transform_indices = @transform_2, window_bounds = array<i64: 1, 32>}, {transform_indices = @transform_3, window_bounds = array<i64: 8, 32>}]} {
    %c0 = arith.constant 0 : index
    %c0_0 = arith.constant 0 : index
    %0 = vector.load %arg1[%c0, %c0_0] : memref<8x32xf32, #tpu.memory_space<vmem>>, vector<8x32xf32>
    %c0_1 = arith.constant 0 : index
    %c0_2 = arith.constant 0 : index
    %1 = vector.load %arg2[%c0_1, %c0_2] : memref<1x32xf32, #tpu.memory_space<vmem>>, vector<1x32xf32>
    %c0_3 = arith.constant 0 : index
    %c0_4 = arith.constant 0 : index
    %2 = vector.load %arg3[%c0_3, %c0_4] : memref<1x32xf32, #tpu.memory_space<vmem>>, vector<1x32xf32>
    %cst = arith.constant 1.000000e+00 : f32
    %3 = vector.broadcast %cst : f32 to vector<32x1xf32>
    %cst_5 = arith.constant dense<0.000000e+00> : vector<8x1xf32>
    %4 = tpu.matmul %0, %3, %cst_5 {dimension_numbers = #tpu.dot_dimension_numbers<[1], [0], [0], [1], [0, 0, 1, 1], [], []>} : vector<8x32xf32>, vector<32x1xf32>, vector<8x1xf32> -> vector<8x1xf32>
    %cst_6 = arith.constant 3.125000e-02 : f32
    %5 = vector.broadcast %cst_6 : f32 to vector<8x1xf32>
    %6 = arith.mulf %4, %5 : vector<8x1xf32>
    %7 = vector.broadcast %6 : vector<8x1xf32> to vector<8x32xf32>
    %8 = arith.subf %0, %7 : vector<8x32xf32>
    %9 = arith.mulf %8, %8 : vector<8x32xf32>
    %cst_7 = arith.constant dense<0.000000e+00> : vector<8x1xf32>
    %10 = tpu.matmul %9, %3, %cst_7 {dimension_numbers = #tpu.dot_dimension_numbers<[1], [0], [0], [1], [0, 0, 1, 1], [], []>} : vector<8x32xf32>, vector<32x1xf32>, vector<8x1xf32> -> vector<8x1xf32>
    %cst_8 = arith.constant 0.0322580636 : f32
    %11 = vector.broadcast %cst_8 : f32 to vector<8x1xf32>
    %12 = arith.mulf %10, %11 : vector<8x1xf32>
    %13 = math.sqrt %12 : vector<8x1xf32>
    %cst_9 = arith.constant 9.99999997E-7 : f32
    %14 = vector.broadcast %cst_9 : f32 to vector<8x1xf32>
    %15 = arith.addf %13, %14 : vector<8x1xf32>
    %16 = tpu.reciprocal %15 {approx = true} : vector<8x1xf32> -> vector<8x1xf32>
    %17 = arith.mulf %15, %16 : vector<8x1xf32>
    %cst_10 = arith.constant 2.000000e+00 : f32
    %18 = vector.broadcast %cst_10 : f32 to vector<8x1xf32>
    %19 = arith.subf %18, %17 : vector<8x1xf32>
    %20 = arith.mulf %16, %19 : vector<8x1xf32>
    %21 = vector.broadcast %20 : vector<8x1xf32> to vector<8x32xf32>
    %22 = arith.mulf %8, %21 : vector<8x32xf32>
    %23 = vector.broadcast %1 : vector<1x32xf32> to vector<8x32xf32>
    %24 = arith.mulf %22, %23 : vector<8x32xf32>
    %25 = vector.broadcast %2 : vector<1x32xf32> to vector<8x32xf32>
    %26 = arith.addf %24, %25 : vector<8x32xf32>
    %c0_11 = arith.constant 0 : index
    %c0_12 = arith.constant 0 : index
    %27 = vector.load %arg4[%c0_11, %c0_12] : memref<8x32xf32, #tpu.memory_space<vmem>>, vector<8x32xf32>
    tpu.vector_store %arg4[%c0_11, %c0_12], %26 {strides = array<i32>} : memref<8x32xf32, #tpu.memory_space<vmem>>, vector<8x32xf32>,
    return
  }
  func.func @transform_0(%arg0: i32) -> (i32, i32) {
    %c0_i32 = arith.constant 0 : i32
    %c0_i32_0 = arith.constant 0 : i32
    return %arg0, %c0_i32 : i32, i32
  }
  func.func @transform_1(%arg0: i32) -> (i32, i32) {
    %c0_i32 = arith.constant 0 : i32
    %c0_i32_0 = arith.constant 0 : i32
    %c0_i32_1 = arith.constant 0 : i32
    return %c0_i32, %c0_i32_0 : i32, i32
  }
  func.func @transform_2(%arg0: i32) -> (i32, i32) {
    %c0_i32 = arith.constant 0 : i32
    %c0_i32_0 = arith.constant 0 : i32
    %c0_i32_1 = arith.constant 0 : i32
    return %c0_i32, %c0_i32_0 : i32, i32
  }
  func.func @transform_3(%arg0: i32) -> (i32, i32) {
    %c0_i32 = arith.constant 0 : i32
    %c0_i32_0 = arith.constant 0 : i32
    return %arg0, %c0_i32 : i32, i32
  }
}

</mosaic_0001>

<llo_original>
// kernel: tpu_custom_call.1
$region0: #{tpu_custom_call.1}
  #allocation0 [shape = 'u32[]', space=smem, size = 0x4, offset = 0x4, fixed_abs, tag = 'smem constant byte address 0x4 - core index']
  #allocation1 [shape = 'u32[144,128]{1,0:T(1,128)}', space=vmem, size = 0x12000, scoped, tag = 'internal scratch']
  %s0 = inlined_call_operand.hbm [shape: f32[16,32], index: 0, kind: input, shape index: {}]
  %s1 = inlined_call_operand.vmem [shape: f32[1,32], index: 1, kind: input, shape index: {}]
  %s2 = inlined_call_operand.vmem [shape: f32[1,32], index: 2, kind: input, shape index: {}]
  %s3 = inlined_call_operand.hbm [shape: f32[16,32], index: 3, kind: output, shape index: {}]
  %s4 = sld [smem:[#allocation0]]
  $region49: #{tpu_custom_call.1} parent=0
    _
  %s6 = ssub.s32 1, %s4
  %s7 = scalar_select 0, %s6, %s4
  $region1: #{tpu_custom_call.1} parent=0
    #allocation2 [shape = 'u8[8192]{0}', space=vmem, size = 0x2000, scoped, tag = 'input window, operand 0']
    #allocation3 [shape = 's32[2]{0}', space=sflag, size = 0x8, scoped, tag = 'scoped memory for tpu_custom_call.1']
    #allocation4 [shape = 's32[2]{0}', space=sflag, size = 0x8, scoped, tag = 'scoped memory for tpu_custom_call.1']
    #allocation5 [shape = 'u8[8192]{0}', space=vmem, size = 0x2000, scoped, tag = 'output window, operand 0']
    %8 = vsyncpa [#allocation3], 0
    %s9 = scalar_lea.sflag [#allocation3], 1
    %10 = vsyncpa %s9, 0
    %11 = vsyncpa [#allocation4], 0
    %s12 = scalar_lea.sflag [#allocation4], 1
    %13 = vsyncpa %s12, 0
    loop: start=0, step=1, limit=4
    $region2: #{tpu_custom_call.1} parent=1 // loop_pre_header
      _
    $region3: #{tpu_custom_call.1} parent=1 // loop_header
      %s15 = sphi 0, %s19
      %p16 = scmp.ge.s32.totalorder %s15, 4
      %s25 = sphi 0, %s27
      %s28 = sphi 0, %s25
      %s29 = sphi 0, %s28
      %s45 = sphi 0, %s29
      %s49 = sphi 0, %s49
      %s51 = sphi 0, %s49
      %s52 = sphi 0, %s51
      %s66 = sphi 0, %s52
      %s70 = sphi 0, %s70
      %s72 = sphi 0, %s70
      %s73 = sphi 0, %s72
      %s87 = sphi 0, %s73
      %s93 = sphi 0, %s95
      %s96 = sphi 0, %s93
      %s97 = sphi 0, %s96
      %s113 = sphi 0, %s97
    $region4: #{tpu_custom_call.1} parent=1 // loop_header_branch
      %18 = sbr.rel (%p16) target = $region8
    $region5: #{tpu_custom_call.1} parent=1 // loop_body
      %s20 = ssub.s32 %s15, 1
      %s21 = ssub.s32 %s15, 2
      %s22 = sadd.s32 %s15, 1
      %s23 = ssub.s32 %s15, %s22
      %p24 = scmp.eq.s32.totalorder %s23, 0
      %s26 = sadd.s32 %s25, 1
      %s27 = scalar_select %p24, %s25, %s26
      %p30 = pneg %p24
      %p31 = scmp.eq.s32.totalorder %s15, 1
      %p32 = por %p30, %p31
      %p33 = scmp.ne.s32.totalorder %s25, %s28
      %p34 = scmp.eq.s32.totalorder %s15, 0
      %p35 = por %p33, %p34
      %p36 = scmp.ne.s32.totalorder %s25, %s28
      %p37 = scmp.eq.s32.totalorder %s20, 1
      %p38 = por %p36, %p37
      %p39 = scmp.ne.s32.totalorder %s28, %s29
      %p40 = scmp.eq.s32.totalorder %s20, 0
      %p41 = por %p39, %p40
      %p42 = scmp.ne.s32.totalorder %s28, %s29
      %p43 = scmp.eq.s32.totalorder %s21, 1
      %p44 = por %p42, %p43
      %p46 = scmp.ne.s32.totalorder %s29, %s45
      %p47 = scmp.eq.s32.totalorder %s21, 0
      %p48 = por %p46, %p47
      %s50 = sadd.s32 %s49, 1
      %p53 = scmp.eq.s32.totalorder %s15, 1
      %p54 = scmp.ne.s32.totalorder %s49, %s51
      %p55 = scmp.eq.s32.totalorder %s15, 0
      %p56 = por %p54, %p55
      %p57 = scmp.ne.s32.totalorder %s49, %s51
      %p58 = scmp.eq.s32.totalorder %s20, 1
      %p59 = por %p57, %p58
      %p60 = scmp.ne.s32.totalorder %s51, %s52
      %p61 = scmp.eq.s32.totalorder %s20, 0
      %p62 = por %p60, %p61
      %p63 = scmp.ne.s32.totalorder %s51, %s52
      %p64 = scmp.eq.s32.totalorder %s21, 1
      %p65 = por %p63, %p64
      %p67 = scmp.ne.s32.totalorder %s52, %s66
      %p68 = scmp.eq.s32.totalorder %s21, 0
      %p69 = por %p67, %p68
      %s71 = sadd.s32 %s70, 1
      %p74 = scmp.eq.s32.totalorder %s15, 1
      %p75 = scmp.ne.s32.totalorder %s70, %s72
      %p76 = scmp.eq.s32.totalorder %s15, 0
      %p77 = por %p75, %p76
      %p78 = scmp.ne.s32.totalorder %s70, %s72
      %p79 = scmp.eq.s32.totalorder %s20, 1
      %p80 = por %p78, %p79
      %p81 = scmp.ne.s32.totalorder %s72, %s73
      %p82 = scmp.eq.s32.totalorder %s20, 0
      %p83 = por %p81, %p82
      %p84 = scmp.ne.s32.totalorder %s72, %s73
      %p85 = scmp.eq.s32.totalorder %s21, 1
      %p86 = por %p84, %p85
      %p88 = scmp.ne.s32.totalorder %s73, %s87
      %p89 = scmp.eq.s32.totalorder %s21, 0
      %p90 = por %p88, %p89
      %s91 = ssub.s32 %s15, %s22
      %p92 = scmp.eq.s32.totalorder %s91, 0
      %s94 = sadd.s32 %s93, 1
      %s95 = scalar_select %p92, %s93, %s94
      %p98 = pneg %p92
      %p99 = scmp.eq.s32.totalorder %s15, 1
      %p100 = por %p98, %p99
      %p101 = scmp.ne.s32.totalorder %s93, %s96
      %p102 = scmp.eq.s32.totalorder %s15, 0
      %p103 = por %p101, %p102
      %p104 = scmp.ne.s32.totalorder %s93, %s96
      %p105 = scmp.eq.s32.totalorder %s20, 1
      %p106 = por %p104, %p105
      %p107 = scmp.ne.s32.totalorder %s96, %s97
      %p108 = scmp.eq.s32.totalorder %s20, 0
      %p109 = por %p107, %p108
      %p110 = scmp.ne.s32.totalorder %s96, %s97
      %p111 = scmp.eq.s32.totalorder %s21, 1
      %p112 = por %p110, %p111
      %p114 = scmp.ne.s32.totalorder %s97, %s113
      %p115 = scmp.eq.s32.totalorder %s21, 0
      %p116 = por %p114, %p115
      %p117 = scmp.le.s32.totalorder 1, %s15
      %p118 = scmp.lt.s32.totalorder %s15, 3
      %p119 = pnand %p117, %p118
      %p120 = pneg %p119
      // Predicated region
      $region9: #{tpu_custom_call.1} parent=5 // pred_check
        _
      $region10: #{tpu_custom_call.1} parent=5 // pred_check_branch
        %122 = sbr.rel (%p119) target = $region12
      $region11: #{tpu_custom_call.1} parent=5 // pred_region
        %s123 = ssub.s32 %s15, 1
        // Predicated region
        $region13: #{tpu_custom_call.1} parent=11 // pred_check
          %p124 = pneg %p62
        $region14: #{tpu_custom_call.1} parent=11 // pred_check_branch
          %126 = sbr.rel (%p124) target = $region16
        $region15: #{tpu_custom_call.1} parent=11 // pred_region
          _
        $region16: #{tpu_custom_call.1} parent=11 // pred_fallthru
          _
        // Predicated region
        $region17: #{tpu_custom_call.1} parent=11 // pred_check
          %p127 = pneg %p83
        $region18: #{tpu_custom_call.1} parent=11 // pred_check_branch
          %129 = sbr.rel (%p127) target = $region20
        $region19: #{tpu_custom_call.1} parent=11 // pred_region
          _
        $region20: #{tpu_custom_call.1} parent=11 // pred_fallthru
          _
      $region12: #{tpu_custom_call.1} parent=5 // pred_fallthru
        _
      %p130 = scmp.lt.s32.totalorder %s15, 2
      // Predicated region
      $region21: #{tpu_custom_call.1} parent=5 // pred_check
        %p131 = pneg %p130
      $region22: #{tpu_custom_call.1} parent=5 // pred_check_branch
        %133 = sbr.rel (%p131) target = $region24
      $region23: #{tpu_custom_call.1} parent=5 // pred_region
        // Predicated region
        $region25: #{tpu_custom_call.1} parent=23 // pred_check
          %p134 = pneg %p35
        $region26: #{tpu_custom_call.1} parent=23 // pred_check_branch
          %136 = sbr.rel (%p134) target = $region28
        $region27: #{tpu_custom_call.1} parent=23 // pred_region
          %s137 = sand.u32 %s25, 1
          %s138 = scalar_lea.sflag [#allocation3], %s137
          %s139 = sand.u32 %s25, 1
          %s140 = smul.addr %s139, 8
          %s141 = scalar_lea.vmem [#allocation2], %s140
          %s143 = ssub.s32 128, 128
          %144 = vsyncadd %s138, %s143
          %s145 = smul.addr %s15, 128
          %s146 = scalar_lea.hbm %s0, %s145
          %s148 = sshll.u32 %s141, 4
          %s149 = int_to_ptr.vmem [resolvable:$true] %s148
          %151 = dma.hbm_to_vmem [thread:$0]  %s146, 128, %s149, %s138
        $region28: #{tpu_custom_call.1} parent=23 // pred_fallthru
          _
      $region24: #{tpu_custom_call.1} parent=5 // pred_fallthru
        _
      %p152 = scmp.le.s32.totalorder 1, %s15
      %p153 = scmp.lt.s32.totalorder %s15, 3
      %p154 = pnand %p152, %p153
      %p155 = pneg %p154
      // Predicated region
      $region29: #{tpu_custom_call.1} parent=5 // pred_check
        _
      $region30: #{tpu_custom_call.1} parent=5 // pred_check_branch
        %157 = sbr.rel (%p154) target = $region32
      $region31: #{tpu_custom_call.1} parent=5 // pred_region
        %s158 = ssub.s32 %s15, 1
        %s159 = sand.u32 %s28, 1
        %s160 = scalar_lea.sflag [#allocation3], %s159
        %s161 = sand.u32 %s28, 1
        %s162 = smul.addr %s161, 8
        %s163 = scalar_lea.vmem [#allocation2], %s162
        // Predicated region
        $region33: #{tpu_custom_call.1} parent=31 // pred_check
          %p164 = pneg %p41
        $region34: #{tpu_custom_call.1} parent=31 // pred_check_branch
          %166 = sbr.rel (%p164) target = $region36
        $region35: #{tpu_custom_call.1} parent=31 // pred_region
          %167 = dma.done %s160, 128
        $region36: #{tpu_custom_call.1} parent=31 // pred_fallthru
          _
        %s168 = sand.u32 %s28, 1
        %s169 = scalar_lea.sflag [#allocation3], %s168
        %s170 = sand.u32 %s28, 1
        %s171 = smul.addr %s170, 8
        %s172 = scalar_lea.vmem [#allocation2], %s171
        %p173 = pneg %p41
        %p174 = pneg %p38
        %p175 = pneg %p62
        %p176 = pneg %p59
        %p177 = pneg %p83
        %p178 = pneg %p80
        %p179 = pneg %p109
        %p180 = pneg %p106
        %s181 = sand.u32 %s96, 1
        %s182 = scalar_lea.sflag [#allocation4], %s181
        %s183 = sand.u32 %s96, 1
        %s184 = smul.addr %s183, 8
        %s185 = scalar_lea.vmem [#allocation5], %s184
        %v186 = vld [vmem:[%s163] sm:$0xff]
        %v187 = vld [vmem:[%s1] sm:$0x1]
        %v188 = vld [vmem:[%s2] sm:$0x1]
        %vm189 = vcmask 261120
        %v191 = vsel %vm189, %v186, 0
        %193 = vmatprep.subr.mxu0 0.0
        %194 = vmatpush1.msra.mxu0 0.0
        %195 = vmatprep.subr.mxu0 0.0
        %196 = vmatpush1.msra.mxu0 0.0
        %197 = vmatprep.subr.mxu0 0.0
        %198 = vmatpush1.msra.mxu0 0.0
        %199 = vmatprep.subr.mxu0 0.0
        %200 = vmatpush1.msra.mxu0 0.0
        %201 = vmatprep.subr.mxu0 0.0
        %202 = vmatpush1.msra.mxu0 0.0
        %203 = vmatprep.subr.mxu0 0.0
        %204 = vmatpush1.msra.mxu0 0.0
        %205 = vmatprep.subr.mxu0 0.0
        %206 = vmatpush1.msra.mxu0 0.0
        %207 = vmatprep.subr.mxu0 0.0
        %208 = vmatpush1.msra.mxu0 0.0
        %209 = vmatprep.subr.mxu0 0.0
        %210 = vmatpush1.msra.mxu0 0.0
        %211 = vmatprep.subr.mxu0 0.0
        %212 = vmatpush1.msra.mxu0 0.0
        %213 = vmatprep.subr.mxu0 0.0
        %214 = vmatpush1.msra.mxu0 0.0
        %215 = vmatprep.subr.mxu0 0.0
        %216 = vmatpush1.msra.mxu0 0.0
        %217 = vmatprep.subr.mxu0 0.0
        %218 = vmatpush1.msra.mxu0 1.0
        %219 = vmatprep.subr.mxu0 0.0
        %220 = vmatpush1.msra.mxu0 1.0
        %221 = vmatprep.subr.mxu0 0.0
        %222 = vmatpush1.msra.mxu0 1.0
        %223 = vmatprep.subr.mxu0 0.0
        %224 = vmatpush1.msra.mxu0 1.0
        %225 = vmatprep.subr.mxu0 0.0
        %226 = vmatpush2.msra.mxu0 0.0
        %227 = vmatprep.subr.mxu0 0.0
        %228 = vmatpush2.msra.mxu0 0.0
        %229 = vmatprep.subr.mxu0 0.0
        %230 = vmatpush2.msra.mxu0 0.0
        %231 = vmatprep.subr.mxu0 0.0
        %232 = vmatpush2.msra.mxu0 0.0
        %233 = vmatprep.subr.mxu0 0.0
        %234 = vmatpush2.msra.mxu0 0.0
        %235 = vmatprep.subr.mxu0 0.0
        %236 = vmatpush2.msra.mxu0 0.0
        %237 = vmatprep.subr.mxu0 0.0
        %238 = vmatpush2.msra.mxu0 0.0
        %239 = vmatprep.subr.mxu0 0.0
        %240 = vmatpush2.msra.mxu0 0.0
        %241 = vmatprep.subr.mxu0 0.0
        %242 = vmatpush2.msra.mxu0 0.0
        %243 = vmatprep.subr.mxu0 0.0
        %244 = vmatpush2.msra.mxu0 0.0
        %245 = vmatprep.subr.mxu0 0.0
        %246 = vmatpush2.msra.mxu0 0.0
        %247 = vmatprep.subr.mxu0 0.0
        %248 = vmatpush2.msra.mxu0 0.0
        %249 = vmatprep.subr.mxu0 0.0
        %250 = vmatpush2.msra.mxu0 0.0
        %251 = vmatprep.subr.mxu0 0.0
        %252 = vmatpush2.msra.mxu0 0.0
        %253 = vmatprep.subr.mxu0 0.0
        %254 = vmatpush2.msra.mxu0 0.0
        %255 = vmatprep.subr.mxu0 0.0
        %256 = vmatpush2.msra.mxu0 0.0
        %257 = vmatprep.mubr.f32.mxu0 0.0
        %258 = vmatmul.mubr.f32.gmra.mxu0 %v191
        %v259 = vpop.f32.mrf.mxu0
        %v260 = vadd.f32 0.0, %v259
        %v261 = vpop.f32.mrf.mxu0
        %262 = vdwg.mxu0
        %v263 = vmul.f32 %v260, 0.03125
        %265 = vset.pattern.permute.xlu0 0
        %266 = vperm.xlu0 %265, %v263
        %v267 = vpop.permute.xlu0 %266
        %v269 = vsub.f32 %v186, %v267
        %v270 = vmul.f32 %v269, %v269
        %v272 = vsel %vm189, %v270, 0
        %274 = vmatprep.subr.mxu0 0.0
        %275 = vmatpush1.msra.mxu0 0.0
        %276 = vmatprep.subr.mxu0 0.0
        %277 = vmatpush1.msra.mxu0 0.0
        %278 = vmatprep.subr.mxu0 0.0
        %279 = vmatpush1.msra.mxu0 0.0
        %280 = vmatprep.subr.mxu0 0.0
        %281 = vmatpush1.msra.mxu0 0.0
        %282 = vmatprep.subr.mxu0 0.0
        %283 = vmatpush1.msra.mxu0 0.0
        %284 = vmatprep.subr.mxu0 0.0
        %285 = vmatpush1.msra.mxu0 0.0
        %286 = vmatprep.subr.mxu0 0.0
        %287 = vmatpush1.msra.mxu0 0.0
        %288 = vmatprep.subr.mxu0 0.0
        %289 = vmatpush1.msra.mxu0 0.0
        %290 = vmatprep.subr.mxu0 0.0
        %291 = vmatpush1.msra.mxu0 0.0
        %292 = vmatprep.subr.mxu0 0.0
        %293 = vmatpush1.msra.mxu0 0.0
        %294 = vmatprep.subr.mxu0 0.0
        %295 = vmatpush1.msra.mxu0 0.0
        %296 = vmatprep.subr.mxu0 0.0
        %297 = vmatpush1.msra.mxu0 0.0
        %298 = vmatprep.subr.mxu0 0.0
        %299 = vmatpush1.msra.mxu0 1.0
        %300 = vmatprep.subr.mxu0 0.0
        %301 = vmatpush1.msra.mxu0 1.0
        %302 = vmatprep.subr.mxu0 0.0
        %303 = vmatpush1.msra.mxu0 1.0
        %304 = vmatprep.subr.mxu0 0.0
        %305 = vmatpush1.msra.mxu0 1.0
        %306 = vmatprep.subr.mxu0 0.0
        %307 = vmatpush2.msra.mxu0 0.0
        %308 = vmatprep.subr.mxu0 0.0
        %309 = vmatpush2.msra.mxu0 0.0
        %310 = vmatprep.subr.mxu0 0.0
        %311 = vmatpush2.msra.mxu0 0.0
        %312 = vmatprep.subr.mxu0 0.0
        %313 = vmatpush2.msra.mxu0 0.0
        %314 = vmatprep.subr.mxu0 0.0
        %315 = vmatpush2.msra.mxu0 0.0
        %316 = vmatprep.subr.mxu0 0.0
        %317 = vmatpush2.msra.mxu0 0.0
        %318 = vmatprep.subr.mxu0 0.0
        %319 = vmatpush2.msra.mxu0 0.0
        %320 = vmatprep.subr.mxu0 0.0
        %321 = vmatpush2.msra.mxu0 0.0
        %322 = vmatprep.subr.mxu0 0.0
        %323 = vmatpush2.msra.mxu0 0.0
        %324 = vmatprep.subr.mxu0 0.0
        %325 = vmatpush2.msra.mxu0 0.0
        %326 = vmatprep.subr.mxu0 0.0
        %327 = vmatpush2.msra.mxu0 0.0
        %328 = vmatprep.subr.mxu0 0.0
        %329 = vmatpush2.msra.mxu0 0.0
        %330 = vmatprep.subr.mxu0 0.0
        %331 = vmatpush2.msra.mxu0 0.0
        %332 = vmatprep.subr.mxu0 0.0
        %333 = vmatpush2.msra.mxu0 0.0
        %334 = vmatprep.subr.mxu0 0.0
        %335 = vmatpush2.msra.mxu0 0.0
        %336 = vmatprep.subr.mxu0 0.0
        %337 = vmatpush2.msra.mxu0 0.0
        %338 = vmatprep.mubr.f32.mxu0 0.0
        %339 = vmatmul.mubr.f32.gmra.mxu0 %v272
        %v340 = vpop.f32.mrf.mxu0
        %v341 = vadd.f32 0.0, %v340
        %v342 = vpop.f32.mrf.mxu0
        %343 = vdwg.mxu0
        %v344 = vmul.f32 %v341, 0.032258064
        %v345 = vrsqrt.pop %v344
        %v346 = vmul.f32 %v344, %v345
        %vm347 = vcmp.eq.f32.partialorder %v344, inf
        %v348 = vsel %vm347, %v344, %v346
        %vm349 = vcmp.eq.f32.partialorder %v344, 0.0
        %v350 = vand.u32 %v344, 2147483648
        %v351 = vsel %vm349, %v350, %v348
        %v352 = vadd.f32 %v351, 1e-06
        %v353 = vrcp.pop %v352
        %v354 = vmul.f32 %v352, %v353
        %v355 = vsub.f32 2.0, %v354
        %v356 = vmul.f32 %v353, %v355
        %358 = vset.pattern.permute.xlu0 0
        %359 = vperm.xlu0 %358, %v356
        %v360 = vpop.permute.xlu0 %359
        %v362 = vmul.f32 %v269, %v360
        %v364 = vlaneseq
        %v365 = vshrl.u32 %v364, 7
        %v366 = vsub.s32 0, %v365
        %v367 = vrot.slane %v187, %v366
        %v369 = vmul.f32 %v362, %v367
        %v371 = vlaneseq
        %v372 = vshrl.u32 %v371, 7
        %v373 = vsub.s32 0, %v372
        %v374 = vrot.slane %v188, %v373
        %v376 = vadd.f32 %v369, %v374
        %377 = vst.msk [vmem:[%s185] sm:$0xff] %vm189, %v376
        %s378 = sand.u32 %s96, 1
        %s379 = scalar_lea.sflag [#allocation4], %s378
        %s380 = sand.u32 %s96, 1
        %s381 = smul.addr %s380, 8
        %s382 = scalar_lea.vmem [#allocation5], %s381
        // Predicated region
        $region37: #{tpu_custom_call.1} parent=31 // pred_check
          %p383 = pneg %p106
        $region38: #{tpu_custom_call.1} parent=31 // pred_check_branch
          %385 = sbr.rel (%p383) target = $region40
        $region39: #{tpu_custom_call.1} parent=31 // pred_region
          %s387 = ssub.s32 128, 128
          %388 = vsyncadd %s379, %s387
          %s389 = smul.addr %s20, 128
          %s390 = scalar_lea.hbm %s3, %s389
          %s392 = sshll.u32 %s382, 4
          %s393 = int_to_ptr.vmem [resolvable:$true] %s392
          %395 = dma.vmem_to_hbm [thread:$0]  %s393, 128, %s390, %s379
        $region40: #{tpu_custom_call.1} parent=31 // pred_fallthru
          _
      $region32: #{tpu_custom_call.1} parent=5 // pred_fallthru
        _
      %p396 = scmp.le.s32.totalorder 2, %s15
      // Predicated region
      $region41: #{tpu_custom_call.1} parent=5 // pred_check
        %p397 = pneg %p396
      $region42: #{tpu_custom_call.1} parent=5 // pred_check_branch
        %399 = sbr.rel (%p397) target = $region44
      $region43: #{tpu_custom_call.1} parent=5 // pred_region
        %s400 = ssub.s32 %s15, 2
        // Predicated region
        $region45: #{tpu_custom_call.1} parent=43 // pred_check
          %p401 = pneg %p112
        $region46: #{tpu_custom_call.1} parent=43 // pred_check_branch
          %403 = sbr.rel (%p401) target = $region48
        $region47: #{tpu_custom_call.1} parent=43 // pred_region
          %s404 = sand.u32 %s97, 1
          %s405 = scalar_lea.sflag [#allocation4], %s404
          %s406 = sand.u32 %s97, 1
          %s407 = smul.addr %s406, 8
          %s408 = scalar_lea.vmem [#allocation5], %s407
          %409 = dma.done %s405, 128
        $region48: #{tpu_custom_call.1} parent=43 // pred_fallthru
          _
      $region44: #{tpu_custom_call.1} parent=5 // pred_fallthru
        _
    $region6: #{tpu_custom_call.1} parent=1 // loop_footer
      %s19 = sadd.s32 1, %s15
    $region7: #{tpu_custom_call.1} parent=1 // loop_footer_branch
      %14 = sbr.rel target = $region3
    $region8: #{tpu_custom_call.1} parent=1 // loop_exit
      _
    %410 = vsyncpa [#allocation3], 1
    %s411 = scalar_lea.sflag [#allocation3], 1
    %412 = vsyncpa %s411, 1
    %413 = vsyncpa [#allocation4], 1
    %s414 = scalar_lea.sflag [#allocation4], 1
    %415 = vsyncpa %s414, 1

</llo_original>
